<compile_context>
chip_gen: v5e
topology: v5e:2x2
jax: 0.10.0
libtpu: 0.0.40
codegen_flags: <defaults>
</compile_context>

<pallas_src>
import numpy as np
import jax
import jax.numpy as jnp
from jax.experimental import pallas as pl
from jax.experimental.pallas import tpu as pltpu


def _round_up(x, m):
    return ((x + m - 1) // m) * m


def _gate_blocked_perm(H, th):
    """Column permutation mapping [i|f|g|o] (each H wide) to per-tile
    gate-blocked layout: for each hidden tile j of width th the 4*th columns
    are [i_j | f_j | o_j | g_j]."""
    cols = []
    for j in range(H // th):
        hs = np.arange(j * th, (j + 1) * th)
        cols.append(np.concatenate([hs, H + hs, 3 * H + hs, 2 * H + hs]))
    return np.concatenate(cols)


def prepare_params(params, *, th=None, compute_dtype=jnp.float32):
    """One-time parameter preparation (do NOT call per step).

    Returns a dict with:
      w_cat : (I+H+A, 4H) fused, transposed, gate-block-permuted weights
      bias  : (1, 4H)     folded (b_ih + b_hh + b_ah), same permutation, f32
    """
    H = params["weight_hh"].shape[1]
    if th is None:
        th = 128 if H % 128 == 0 else H
    assert H % th == 0, "hidden tile must divide hidden_size"

    # Fused operand: x @ W_ih.T + hx @ W_hh.T + a @ W_ah.T == [x|hx|a] @ W_cat
    w_cat = jnp.concatenate(
        [params["weight_ih"].T, params["weight_hh"].T, params["weight_ah"].T],
        axis=0,
    )                                                    # (I+H+A, 4H)
    bias = params["bias_ih"] + params["bias_hh"] + params["bias_ah"]  # (4H,)

    perm = _gate_blocked_perm(H, th)
    w_cat = w_cat[:, perm].astype(compute_dtype)
    bias = bias[perm].reshape(1, 4 * H).astype(jnp.float32)

    return {"w_cat": w_cat, "bias": bias, "hidden_size": H, "th": th}


def alstm_cell_kernel(xcat_ref, cx_ref, w_ref, b_ref, hy_ref, cy_ref):
    th = hy_ref.shape[-1]
    # Single fused matmul on the MXU, f32 accumulation.
    gates = jnp.dot(xcat_ref[...], w_ref[...],
                    preferred_element_type=jnp.float32)
    gates = gates + b_ref[...]                       # (tb, 4*th), f32

    # Gate-blocked columns: [i | f | o | g] -> one contiguous sigmoid, one tanh.
    sig = jax.nn.sigmoid(gates[:, : 3 * th])
    cellgate = jnp.tanh(gates[:, 3 * th:])
    ingate = sig[:, :th]
    forgetgate = sig[:, th: 2 * th]
    outgate = sig[:, 2 * th: 3 * th]

    cy = forgetgate * cx_ref[...].astype(jnp.float32) + ingate * cellgate
    hy = outgate * jnp.tanh(cy)

    hy_ref[...] = hy.astype(hy_ref.dtype)
    cy_ref[...] = cy.astype(cy_ref.dtype)


def alstm_cell(x, hx, cx, attr_hidden, prepared, *, tb=None):
    """Pallas aLSTMCell forward. `prepared` comes from prepare_params()."""
    w_cat, bias = prepared["w_cat"], prepared["bias"]
    H, th = prepared["hidden_size"], prepared["th"]
    F = w_cat.shape[0]
    B = x.shape[0]
    state_dtype = cx.dtype

    if tb is None:
        tb = 256 if B >= 256 else _round_up(B, 8)
    B_pad = _round_up(B, tb)

    xcat = jnp.concatenate([x, hx, attr_hidden], axis=1).astype(w_cat.dtype)
    cx_in = cx
    if B_pad != B:
        xcat = jnp.pad(xcat, ((0, B_pad - B), (0, 0)))
        cx_in = jnp.pad(cx, ((0, B_pad - B), (0, 0)))

    grid = (B_pad // tb, H // th)

    cost = pl.CostEstimate(
        flops=2 * B_pad * F * 4 * H,
        transcendentals=5 * B_pad * H,
        bytes_accessed=(w_cat.size * w_cat.dtype.itemsize
                        + xcat.size * xcat.dtype.itemsize
                        + bias.size * 4
                        + cx_in.size * cx_in.dtype.itemsize
                        + 2 * B_pad * H * jnp.dtype(state_dtype).itemsize),
    )

    hy, cy = pl.pallas_call(
        alstm_cell_kernel,
        out_shape=(
            jax.ShapeDtypeStruct((B_pad, H), state_dtype),
            jax.ShapeDtypeStruct((B_pad, H), state_dtype),
        ),
        grid_spec=pltpu.PrefetchScalarGridSpec(
            num_scalar_prefetch=0,
            grid=grid,
            in_specs=[
                pl.BlockSpec((tb, F), lambda i, j: (i, 0)),        # [x|hx|a]
                pl.BlockSpec((tb, th), lambda i, j: (i, j)),       # cx
                pl.BlockSpec((F, 4 * th), lambda i, j: (0, j)),    # W_cat
                pl.BlockSpec((1, 4 * th), lambda i, j: (0, j)),    # bias
            ],
            out_specs=[
                pl.BlockSpec((tb, th), lambda i, j: (i, j)),       # hy
                pl.BlockSpec((tb, th), lambda i, j: (i, j)),       # cy
            ],
        ),
        compiler_params=pltpu.CompilerParams(
            dimension_semantics=("parallel", "parallel"),
            vmem_limit_bytes=48 * 1024 * 1024,
        ),
        cost_estimate=cost,
    )(xcat, cx_in, w_cat, bias)

    if B_pad != B:
        hy, cy = hy[:B], cy[:B]
    return hy, cy


def init_params(key, input_size, hidden_size, attrhidden_size):
    """Deterministic randn-style init mirroring the PyTorch __init__ shapes."""
    ks = jax.random.split(key, 6)
    return {
        "weight_ih": jax.random.normal(ks[0], (4 * hidden_size, input_size), jnp.float32),
        "weight_hh": jax.random.normal(ks[1], (4 * hidden_size, hidden_size), jnp.float32),
        "weight_ah": jax.random.normal(ks[2], (4 * hidden_size, attrhidden_size), jnp.float32),
        "bias_ih":   jax.random.normal(ks[3], (4 * hidden_size,), jnp.float32),
        "bias_hh":   jax.random.normal(ks[4], (4 * hidden_size,), jnp.float32),
        "bias_ah":   jax.random.normal(ks[5], (4 * hidden_size,), jnp.float32),
    }


def reference_alstm_cell(x, hx, cx, attr_hidden, params):
    """Pure-JAX reference matching the PyTorch forward line-by-line."""
    gates = (x @ params["weight_ih"].T + params["bias_ih"]
             + hx @ params["weight_hh"].T + params["bias_hh"]
             + attr_hidden @ params["weight_ah"].T + params["bias_ah"])
    i, f, g, o = jnp.split(gates, 4, axis=1)
    i, f, g, o = jax.nn.sigmoid(i), jax.nn.sigmoid(f), jnp.tanh(g), jax.nn.sigmoid(o)
    cy = f * cx + i * g
    hy = o * jnp.tanh(cy)
    return hy, cy


if __name__ == "__main__":
    batch = 8
    input_size = 16
    hidden_size = 32
    attrhidden_size = 8

    key = jax.random.PRNGKey(0)
    kp, kx, kh, kc, ka = jax.random.split(key, 5)

    params = init_params(kp, input_size, hidden_size, attrhidden_size)
    x = jax.random.normal(kx, (batch, input_size), jnp.float32)
    hx = jax.random.normal(kh, (batch, hidden_size), jnp.float32)
    cx = jax.random.normal(kc, (batch, hidden_size), jnp.float32)
    attr_hidden = jax.random.normal(ka, (batch, attrhidden_size), jnp.float32)

    # ---- f32 path: exact parity with the PyTorch-equivalent reference ----
    prepared_f32 = prepare_params(params, compute_dtype=jnp.float32)
    hy, cy = alstm_cell(x, hx, cx, attr_hidden, prepared_f32)
    jax.block_until_ready((hy, cy))

    hy_ref, cy_ref = reference_alstm_cell(x, hx, cx, attr_hidden, params)
    assert jnp.allclose(hy, hy_ref, atol=1e-4, rtol=1e-4)
    assert jnp.allclose(cy, cy_ref, atol=1e-4, rtol=1e-4)

    # ---- bf16 weight/activation path (half HBM weight traffic) ----
    prepared_bf16 = prepare_params(params, compute_dtype=jnp.bfloat16)
    hy_b, cy_b = alstm_cell(x, hx, cx, attr_hidden, prepared_bf16)
    jax.block_until_ready((hy_b, cy_b))

    # Compare against a reference with the SAME bf16 quantization of the
    # matmul operands (f32 accumulation), so only summation order differs.
    q = lambda a: a.astype(jnp.bfloat16).astype(jnp.float32)
    params_q = {k: (q(v) if k.startswith("weight") else v) for k, v in params.items()}
    hy_rq, cy_rq = reference_alstm_cell(q(x), q(hx), cx, q(attr_hidden), params_q)
    assert jnp.allclose(hy_b, hy_rq, atol=1e-2, rtol=1e-2)
    assert jnp.allclose(cy_b, cy_rq, atol=1e-2, rtol=1e-2)

    print("KERNEL_OK")
</pallas_src>

<mosaic_0001>
module attributes {stable_mosaic.version = 11 : i64} {
  func.func @alstm_cell_kernel(%arg0: i32, %arg1: i32, %arg2: memref<8x56xf32, #tpu.memory_space<vmem>>, %arg3: memref<8x32xf32, #tpu.memory_space<vmem>>, %arg4: memref<56x128xf32, #tpu.memory_space<vmem>>, %arg5: memref<1x128xf32, #tpu.memory_space<vmem>>, %arg6: memref<8x32xf32, #tpu.memory_space<vmem>>, %arg7: memref<8x32xf32, #tpu.memory_space<vmem>>) attributes {dimension_semantics = [#tpu.dimension_semantics<parallel>, #tpu.dimension_semantics<parallel>], iteration_bounds = array<i64: 1, 1>, scalar_prefetch = 0 : i64, scratch_operands = 0 : i64, tpu.core_type = #tpu.core_type<tc>, window_params = [{transform_indices = @transform_0, window_bounds = array<i64: 8, 56>}, {transform_indices = @transform_1, window_bounds = array<i64: 8, 32>}, {transform_indices = @transform_2, window_bounds = array<i64: 56, 128>}, {transform_indices = @transform_3, window_bounds = array<i64: 1, 128>}, {transform_indices = @transform_4, window_bounds = array<i64: 8, 32>}, {transform_indices = @transform_5, window_bounds = array<i64: 8, 32>}]} {
    %c0 = arith.constant 0 : index
    %c0_0 = arith.constant 0 : index
    %0 = vector.load %arg2[%c0, %c0_0] : memref<8x56xf32, #tpu.memory_space<vmem>>, vector<8x56xf32>
    %c0_1 = arith.constant 0 : index
    %c0_2 = arith.constant 0 : index
    %1 = vector.load %arg4[%c0_1, %c0_2] : memref<56x128xf32, #tpu.memory_space<vmem>>, vector<56x128xf32>
    %cst = arith.constant dense<0.000000e+00> : vector<8x128xf32>
    %2 = tpu.matmul %0, %1, %cst {dimension_numbers = #tpu.dot_dimension_numbers<[1], [0], [0], [1], [0, 0, 1, 1], [], []>} : vector<8x56xf32>, vector<56x128xf32>, vector<8x128xf32> -> vector<8x128xf32>
    %c0_3 = arith.constant 0 : index
    %c0_4 = arith.constant 0 : index
    %3 = vector.load %arg5[%c0_3, %c0_4] : memref<1x128xf32, #tpu.memory_space<vmem>>, vector<1x128xf32>
    %4 = vector.broadcast %3 : vector<1x128xf32> to vector<8x128xf32>
    %5 = arith.addf %2, %4 : vector<8x128xf32>
    %6 = vector.extract_strided_slice %5 {offsets = [0, 0], sizes = [8, 96], strides = [1, 1]} : vector<8x128xf32> to vector<8x96xf32>
    %7 = arith.negf %6 : vector<8x96xf32>
    %8 = math.exp %7 : vector<8x96xf32>
    %cst_5 = arith.constant 1.000000e+00 : f32
    %9 = vector.broadcast %cst_5 : f32 to vector<8x96xf32>
    %10 = arith.addf %9, %8 : vector<8x96xf32>
    %11 = arith.divf %9, %10 : vector<8x96xf32>
    %12 = vector.extract_strided_slice %5 {offsets = [0, 96], sizes = [8, 32], strides = [1, 1]} : vector<8x128xf32> to vector<8x32xf32>
    %13 = math.tanh %12 : vector<8x32xf32>
    %14 = vector.extract_strided_slice %11 {offsets = [0, 0], sizes = [8, 32], strides = [1, 1]} : vector<8x96xf32> to vector<8x32xf32>
    %15 = vector.extract_strided_slice %11 {offsets = [0, 32], sizes = [8, 32], strides = [1, 1]} : vector<8x96xf32> to vector<8x32xf32>
    %16 = vector.extract_strided_slice %11 {offsets = [0, 64], sizes = [8, 32], strides = [1, 1]} : vector<8x96xf32> to vector<8x32xf32>
    %c0_6 = arith.constant 0 : index
    %c0_7 = arith.constant 0 : index
    %17 = vector.load %arg3[%c0_6, %c0_7] : memref<8x32xf32, #tpu.memory_space<vmem>>, vector<8x32xf32>
    %18 = arith.mulf %15, %17 : vector<8x32xf32>
    %19 = arith.mulf %14, %13 : vector<8x32xf32>
    %20 = arith.addf %18, %19 : vector<8x32xf32>
    %21 = math.tanh %20 : vector<8x32xf32>
    %22 = arith.mulf %16, %21 : vector<8x32xf32>
    %c0_8 = arith.constant 0 : index
    %c0_9 = arith.constant 0 : index
    %23 = vector.load %arg6[%c0_8, %c0_9] : memref<8x32xf32, #tpu.memory_space<vmem>>, vector<8x32xf32>
    tpu.vector_store %arg6[%c0_8, %c0_9], %22 {strides = array<i32>} : memref<8x32xf32, #tpu.memory_space<vmem>>, vector<8x32xf32>,
    %c0_10 = arith.constant 0 : index
    %c0_11 = arith.constant 0 : index
    %24 = vector.load %arg7[%c0_10, %c0_11] : memref<8x32xf32, #tpu.memory_space<vmem>>, vector<8x32xf32>
    tpu.vector_store %arg7[%c0_10, %c0_11], %20 {strides = array<i32>} : memref<8x32xf32, #tpu.memory_space<vmem>>, vector<8x32xf32>,
    return
  }
  func.func @transform_0(%arg0: i32, %arg1: i32) -> (i32, i32) {
    %c0_i32 = arith.constant 0 : i32
    %c0_i32_0 = arith.constant 0 : i32
    return %arg0, %c0_i32 : i32, i32
  }
  func.func @transform_1(%arg0: i32, %arg1: i32) -> (i32, i32) {
    %c0_i32 = arith.constant 0 : i32
    return %arg0, %arg1 : i32, i32
  }
  func.func @transform_2(%arg0: i32, %arg1: i32) -> (i32, i32) {
    %c0_i32 = arith.constant 0 : i32
    %c0_i32_0 = arith.constant 0 : i32
    return %c0_i32, %arg1 : i32, i32
  }
  func.func @transform_3(%arg0: i32, %arg1: i32) -> (i32, i32) {
    %c0_i32 = arith.constant 0 : i32
    %c0_i32_0 = arith.constant 0 : i32
    return %c0_i32, %arg1 : i32, i32
  }
  func.func @transform_4(%arg0: i32, %arg1: i32) -> (i32, i32) {
    %c0_i32 = arith.constant 0 : i32
    return %arg0, %arg1 : i32, i32
  }
  func.func @transform_5(%arg0: i32, %arg1: i32) -> (i32, i32) {
    %c0_i32 = arith.constant 0 : i32
    return %arg0, %arg1 : i32, i32
  }
}

</mosaic_0001>

<llo_original>
// kernel: tpu_custom_call.1
$region0: #{tpu_custom_call.1}
  #allocation0 [shape = 'u32[]', space=smem, size = 0x4, offset = 0x4, fixed_abs, tag = 'smem constant byte address 0x4 - core index']
  #allocation1 [shape = 'u32[72,128]{1,0:T(1,128)}', space=vmem, size = 0x9000, scoped, tag = 'internal scratch']
  %s0 = inlined_call_operand.hbm [shape: f32[8,56], index: 0, kind: input, shape index: {}]
  %s1 = inlined_call_operand.hbm [shape: f32[8,32], index: 1, kind: input, shape index: {}]
  %s2 = inlined_call_operand.hbm [shape: f32[56,128], index: 2, kind: input, shape index: {}]
  %s3 = inlined_call_operand.vmem [shape: f32[1,128], index: 3, kind: input, shape index: {}]
  %s4 = inlined_call_operand.hbm [shape: f32[8,32], index: 4, kind: output, shape index: {0}]
  %s5 = inlined_call_operand.hbm [shape: f32[8,32], index: 5, kind: output, shape index: {1}]
  %6 = xla_tuple %s4, %s5
  %s7 = sld [smem:[#allocation0]]
  $region46: #{tpu_custom_call.1} parent=0
    _
  %s9 = ssub.s32 1, %s7
  %s10 = scalar_select 0, %s9, %s7
  $region1: #{tpu_custom_call.1} parent=0
    #allocation2 [shape = 'u8[4096]{0}', space=vmem, size = 0x1000, scoped, tag = 'input window, operand 0, single buffered']
    #allocation3 [shape = 's32[1]{0}', space=sflag, size = 0x4, scoped, tag = 'scoped memory for tpu_custom_call.1']
    #allocation4 [shape = 's32[1]{0}', space=sflag, size = 0x4, scoped, tag = 'scoped memory for tpu_custom_call.1']
    #allocation5 [shape = 'u8[4096]{0}', space=vmem, size = 0x1000, scoped, tag = 'input window, operand 1, single buffered']
    #allocation6 [shape = 's32[1]{0}', space=sflag, size = 0x4, scoped, tag = 'scoped memory for tpu_custom_call.1']
    #allocation7 [shape = 'u8[28672]{0}', space=vmem, size = 0x7000, scoped, tag = 'input window, operand 2, single buffered']
    #allocation8 [shape = 'u8[4096]{0}', space=vmem, size = 0x1000, scoped, tag = 'output window, operand 0, single buffered']
    #allocation9 [shape = 'u8[4096]{0}', space=vmem, size = 0x1000, scoped, tag = 'output window, operand 1, single buffered']
    #allocation10 [shape = 's32[1]{0}', space=sflag, size = 0x4, scoped, tag = 'scoped memory for tpu_custom_call.1']
    %11 = vsyncpa [#allocation3], 0
    %12 = vsyncpa [#allocation6], 0
    %13 = vsyncpa [#allocation4], 0
    %14 = vsyncpa [#allocation10], 0
    // Predicated region
    $region2: #{tpu_custom_call.1} parent=1 // pred_check
      _
    $region3: #{tpu_custom_call.1} parent=1 // pred_check_branch
      %16 = sbr.rel (0) target = $region5
    $region4: #{tpu_custom_call.1} parent=1 // pred_region
      %18 = vsyncadd [#allocation3], 0
      %s20 = sshll.u32 %s0, 4
      %s21 = int_to_ptr.hbm [resolvable:$true] %s20
      %s22 = sshll.u32 [#allocation2], 4
      %s23 = int_to_ptr.vmem [resolvable:$true] %s22
      %25 = dma.hbm_to_vmem [thread:$0]  %s21, 128, %s23, [#allocation3]
    $region5: #{tpu_custom_call.1} parent=1 // pred_fallthru
      _
    // Predicated region
    $region6: #{tpu_custom_call.1} parent=1 // pred_check
      _
    $region7: #{tpu_custom_call.1} parent=1 // pred_check_branch
      %27 = sbr.rel (0) target = $region9
    $region8: #{tpu_custom_call.1} parent=1 // pred_region
      %29 = vsyncadd [#allocation6], 0
      %s31 = sshll.u32 %s1, 4
      %s32 = int_to_ptr.hbm [resolvable:$true] %s31
      %s33 = sshll.u32 [#allocation5], 4
      %s34 = int_to_ptr.vmem [resolvable:$true] %s33
      %36 = dma.hbm_to_vmem [thread:$0]  %s32, 128, %s34, [#allocation6]
    $region9: #{tpu_custom_call.1} parent=1 // pred_fallthru
      _
    // Predicated region
    $region10: #{tpu_custom_call.1} parent=1 // pred_check
      _
    $region11: #{tpu_custom_call.1} parent=1 // pred_check_branch
      %38 = sbr.rel (0) target = $region13
    $region12: #{tpu_custom_call.1} parent=1 // pred_region
      %40 = vsyncadd [#allocation6], 0
      %s41 = sshll.u32 %s2, 4
      %s42 = int_to_ptr.hbm [resolvable:$true] %s41
      %s43 = sshll.u32 [#allocation7], 4
      %s44 = int_to_ptr.vmem [resolvable:$true] %s43
      %49 = dma.hbm_to_vmem [thread:$0]  %s42, 896, %s44, [#allocation6], 128, 128, 8
    $region13: #{tpu_custom_call.1} parent=1 // pred_fallthru
      _
    // Predicated region
    $region14: #{tpu_custom_call.1} parent=1 // pred_check
      _
    $region15: #{tpu_custom_call.1} parent=1 // pred_check_branch
      %51 = sbr.rel (0) target = $region17
    $region16: #{tpu_custom_call.1} parent=1 // pred_region
      _
    $region17: #{tpu_custom_call.1} parent=1 // pred_fallthru
      _
    // Predicated region
    $region18: #{tpu_custom_call.1} parent=1 // pred_check
      _
    $region19: #{tpu_custom_call.1} parent=1 // pred_check_branch
      %53 = sbr.rel (0) target = $region21
    $region20: #{tpu_custom_call.1} parent=1 // pred_region
      %55 = dma.done [#allocation3], 128
    $region21: #{tpu_custom_call.1} parent=1 // pred_fallthru
      _
    // Predicated region
    $region22: #{tpu_custom_call.1} parent=1 // pred_check
      _
    $region23: #{tpu_custom_call.1} parent=1 // pred_check_branch
      %57 = sbr.rel (0) target = $region25
    $region24: #{tpu_custom_call.1} parent=1 // pred_region
      %59 = dma.done [#allocation6], 128
    $region25: #{tpu_custom_call.1} parent=1 // pred_fallthru
      _
    // Predicated region
    $region26: #{tpu_custom_call.1} parent=1 // pred_check
      _
    $region27: #{tpu_custom_call.1} parent=1 // pred_check_branch
      %61 = sbr.rel (0) target = $region29
    $region28: #{tpu_custom_call.1} parent=1 // pred_region
      %63 = dma.done [#allocation6], 896
    $region29: #{tpu_custom_call.1} parent=1 // pred_fallthru
      _
    %v64 = vld [vmem:[#allocation2] sm:$0xff]
    %v65 = vld [vmem:[#allocation7] sm:$0xff]
    %v66 = vld [vmem:[#allocation7 + $0x8] sm:$0xff]
    %v67 = vld [vmem:[#allocation7 + $0x10] sm:$0xff]
    %v68 = vld [vmem:[#allocation7 + $0x18] sm:$0xff]
    %v69 = vld [vmem:[#allocation7 + $0x20] sm:$0xff]
    %v70 = vld [vmem:[#allocation7 + $0x28] sm:$0xff]
    %v71 = vld [vmem:[#allocation7 + $0x30] sm:$0xff]
    %v72 = vld [vmem:[%s3] sm:$0x1]
    %v74 = vperm.slane %v72, 0
    %vm76 = vcmask 457728
    %v78 = vsel %vm76, %v64, 0
    %80 = vmatpush.msra.mxu0 0.0
    %81 = vmatpush.msra.mxu0 0.0
    %82 = vmatpush.msra.mxu0 0.0
    %83 = vmatpush.msra.mxu0 0.0
    %84 = vmatpush.msra.mxu0 0.0
    %85 = vmatpush.msra.mxu0 0.0
    %86 = vmatpush.msra.mxu0 0.0
    %87 = vmatpush.msra.mxu0 0.0
    %88 = vmatpush.msra.mxu0 0.0
    %89 = vmatpush.msra.mxu0 %v71
    %90 = vmatpush.msra.mxu0 %v70
    %91 = vmatpush.msra.mxu0 %v69
    %92 = vmatpush.msra.mxu0 %v68
    %93 = vmatpush.msra.mxu0 %v67
    %94 = vmatpush.msra.mxu0 %v66
    %95 = vmatpush.msra.mxu0 %v65
    %96 = vmatmul.f32.gmra.mxu0 %v78
    %v97 = vpop.f32.mrf.mxu0
    %v98 = vadd.f32 %v74, %v97
    %99 = vdwg.mxu0
    %v100 = vxor.u32 %v98, 2147483648
    %v101 = vmul.f32 %v100, 1.442695
    %v102 = vpow.pop %v101
    %v103 = vadd.f32 %v102, 1.0
    %v104 = vrcp.pop %v103
    %v105 = vmul.f32 %v103, %v104
    %v106 = vsub.f32 1.0, %v105
    %v107 = vmul.f32 %v104, %v106
    %v108 = vadd.f32 %v104, %v107
    %vm109 = vweird.f32 %v103
    %vm110 = vweird.f32 %v104
    %vm111 = vmor %vm109, %vm110
    %v112 = vsel %vm111, %v104, %v108
    %v113 = vand.u32 2147483647, %v103
    %vm114 = vcmp.eq.f32.partialorder %v113, 8.507059e+37
    %v115 = vand.u32 %v103, 2147483648
    %v116 = vor.u32 1.1754944e-38, %v115
    %v117 = vsel %vm114, %v116, %v112
    %v118 = vmul.f32 1.0, %v117
    %v119 = vtanh.pop %v98
    %v120 = vld [vmem:[#allocation5] sm:$0xff]
    %122 = vrot.lane.b32.xlu0 %v120, 32
    %v123 = vpop.permute.xlu0 %122
    %v125 = vmul.f32 %v118, %v123
    %127 = vrot.lane.b32.xlu0 %v119, 32
    %v128 = vpop.permute.xlu0 %127
    %v130 = vmul.f32 %v118, %v128
    %132 = vrot.lane.b32.xlu0 %v130, 32
    %v133 = vpop.permute.xlu0 %132
    %v135 = vadd.f32 %v125, %v133
    %v136 = vtanh.pop %v135
    %138 = vrot.lane.b32.xlu0 %v136, 32
    %v139 = vpop.permute.xlu0 %138
    %v141 = vmul.f32 %v118, %v139
    %143 = vrot.lane.b32.xlu0 %v141, 64
    %v144 = vpop.permute.xlu0 %143
    %vm146 = vcmask 261120
    %147 = vst.msk [vmem:[#allocation8] sm:$0xff] %vm146, %v144
    %149 = vrot.lane.b32.xlu0 %v135, 96
    %v150 = vpop.permute.xlu0 %149
    %152 = vst.msk [vmem:[#allocation9] sm:$0xff] %vm146, %v150
    // Predicated region
    $region30: #{tpu_custom_call.1} parent=1 // pred_check
      _
    $region31: #{tpu_custom_call.1} parent=1 // pred_check_branch
      %154 = sbr.rel (0) target = $region33
    $region32: #{tpu_custom_call.1} parent=1 // pred_region
      %156 = vsyncadd [#allocation4], 0
      %s158 = sshll.u32 [#allocation8], 4
      %s159 = int_to_ptr.vmem [resolvable:$true] %s158
      %s160 = sshll.u32 %s4, 4
      %s161 = int_to_ptr.hbm [resolvable:$true] %s160
      %163 = dma.vmem_to_hbm [thread:$0]  %s159, 128, %s161, [#allocation4]
    $region33: #{tpu_custom_call.1} parent=1 // pred_fallthru
      _
    // Predicated region
    $region34: #{tpu_custom_call.1} parent=1 // pred_check
      _
    $region35: #{tpu_custom_call.1} parent=1 // pred_check_branch
      %165 = sbr.rel (0) target = $region37
    $region36: #{tpu_custom_call.1} parent=1 // pred_region
      %167 = vsyncadd [#allocation10], 0
      %s169 = sshll.u32 [#allocation9], 4
      %s170 = int_to_ptr.vmem [resolvable:$true] %s169
      %s171 = sshll.u32 %s5, 4
      %s172 = int_to_ptr.hbm [resolvable:$true] %s171
      %174 = dma.vmem_to_hbm [thread:$0]  %s170, 128, %s172, [#allocation10]
    $region37: #{tpu_custom_call.1} parent=1 // pred_fallthru
      _
    // Predicated region
    $region38: #{tpu_custom_call.1} parent=1 // pred_check
      _
    $region39: #{tpu_custom_call.1} parent=1 // pred_check_branch
      %176 = sbr.rel (0) target = $region41
    $region40: #{tpu_custom_call.1} parent=1 // pred_region
      %178 = dma.done [#allocation4], 128
    $region41: #{tpu_custom_call.1} parent=1 // pred_fallthru
      _
    // Predicated region
    $region42: #{tpu_custom_call.1} parent=1 // pred_check
      _
    $region43: #{tpu_custom_call.1} parent=1 // pred_check_branch
      %180 = sbr.rel (0) target = $region45
    $region44: #{tpu_custom_call.1} parent=1 // pred_region
      %182 = dma.done [#allocation10], 128
    $region45: #{tpu_custom_call.1} parent=1 // pred_fallthru
      _
    %183 = vsyncpa [#allocation3], 1
    %184 = vsyncpa [#allocation6], 1
    %185 = vsyncpa [#allocation4], 1
    %186 = vsyncpa [#allocation10], 1

</llo_original>
